<compile_context>
chip_gen: v5e
topology: v5e:2x2
jax: 0.10.0
libtpu: 0.0.40
codegen_flags: <defaults>
</compile_context>

<pallas_src>
import math
import functools

import jax
import jax.numpy as jnp
from jax.experimental import pallas as pl
from jax.experimental.pallas import tpu as pltpu


# -----------------------------------------------------------------------------
# Pallas kernel: fused graph convolution, whole batch, 2 MXU passes total
# -----------------------------------------------------------------------------
def _gcn_kernel(x_ref, w_ref, att_ref, *rest, batch, node_n, out_f, has_bias):
    if has_bias:
        bias_ref, o_ref, sp_ref = rest
    else:
        o_ref, sp_ref = rest

    # (1) ONE packed MXU pass for the whole batch: (B*N, Fin) @ (Fin, Fout),
    #     f32 accumulation.
    support = jnp.dot(x_ref[...], w_ref[...],
                      preferred_element_type=jnp.float32)       # (B*N, Fout) f32

    # (2) Pack the batch into the lane dimension:
    #       sp[m, b*Fout:(b+1)*Fout] = support[b*N + m, :]
    #     B tiny VMEM stores into scratch; row slices at multiples of N (=48,
    #     a multiple of 8) stay sublane-aligned, lane offsets are masked vst.
    for b in range(batch):
        sp_ref[:, b * out_f:(b + 1) * out_f] = \
            support[b * node_n:(b + 1) * node_n, :]

    # (3) ONE shared-att MXU pass for the whole batch:
    #     (N, N) @ (N, B*Fout), f32 accumulation.
    out = jnp.dot(att_ref[...], sp_ref[...],
                  preferred_element_type=jnp.float32)            # (N, B*Fout)

    # (4) Single f32 epilogue add (bias already tiled to the B*Fout lane layout).
    if has_bias:
        out = out + bias_ref[...]

    # (5) Lane-dense store of the packed slab (un-packed in the wrapper).
    o_ref[...] = out.astype(o_ref.dtype)


def graph_conv(x, weight, att, bias=None, *, out_dtype=None):
    """out[b] = att @ (x[b] @ weight) (+ bias).  x: (B, N, Fin) or (N, Fin)."""
    squeeze = (x.ndim == 2)
    if squeeze:
        x = x[None]
    B, N, Fin = x.shape
    Fout = weight.shape[1]
    assert att.shape == (N, N)
    if out_dtype is None:
        out_dtype = x.dtype

    # Flatten the batch into rows so x@W runs as one packed MXU pass.
    x2 = x.reshape(B * N, Fin)

    has_bias = bias is not None

    args = [x2, weight, att]
    vmem = pl.BlockSpec(memory_space=pltpu.MemorySpace.VMEM)
    in_specs = [vmem, vmem, vmem]
    if has_bias:
        # Bias tiled ONCE to the packed B*Fout lane layout (f32 epilogue add);
        # a (B*Fout,) prep op, negligible vs. per-batch in-kernel broadcasts.
        args.append(jnp.tile(bias.astype(jnp.float32), B).reshape(1, B * Fout))
        in_specs.append(vmem)

    kernel = functools.partial(
        _gcn_kernel, batch=B, node_n=N, out_f=Fout, has_bias=has_bias)

    flops = 2 * B * N * Fin * Fout + 2 * B * N * N * Fout
    bytes_accessed = (x2.size * x2.dtype.itemsize
                      + weight.size * weight.dtype.itemsize
                      + att.size * att.dtype.itemsize
                      + (B * Fout * 4 if has_bias else 0)
                      + N * B * Fout * jnp.dtype(out_dtype).itemsize)

    out_packed = pl.pallas_call(
        kernel,
        out_shape=jax.ShapeDtypeStruct((N, B * Fout), out_dtype),
        in_specs=in_specs,
        out_specs=vmem,
        scratch_shapes=[pltpu.VMEM((N, B * Fout), jnp.float32)],
        cost_estimate=pl.CostEstimate(
            flops=flops, transcendentals=0, bytes_accessed=bytes_accessed),
    )(*args)

    # Un-pack the lane-dense slab: (N, B*Fout) -> (B, N, Fout).
    # Layout plumbing kept outside the kernel.
    out = jnp.transpose(out_packed.reshape(N, B, Fout), (1, 0, 2))
    return out[0] if squeeze else out


# -----------------------------------------------------------------------------
# Pure-JAX reference (mirrors the PyTorch forward exactly)
# -----------------------------------------------------------------------------
def graph_conv_ref(x, weight, att, bias=None):
    support = jnp.matmul(x, weight)          # (B, N, Fout)
    out = jnp.matmul(att, support)           # broadcast over batch, like torch
    return out + bias if bias is not None else out


# -----------------------------------------------------------------------------
if __name__ == "__main__":
    B, node_n, in_f, out_f = 2, 48, 16, 32

    key = jax.random.PRNGKey(0)
    kx, kw, ka, kb, kx2 = jax.random.split(key, 5)

    # Matches GraphConvolution.reset_parameters(): uniform(-stdv, stdv).
    stdv = 1.0 / math.sqrt(out_f)
    weight = jax.random.uniform(kw, (in_f, out_f), jnp.float32, -stdv, stdv)
    att = jax.random.uniform(ka, (node_n, node_n), jnp.float32, -stdv, stdv)
    bias = jax.random.uniform(kb, (out_f,), jnp.float32, -stdv, stdv)
    x = jax.random.normal(kx, (B, node_n, in_f), jnp.float32)

    # 1) encoder-shaped (Fin=16 -> Fout=32), with bias.
    y = jax.block_until_ready(graph_conv(x, weight, att, bias))
    y_ref = graph_conv_ref(x, weight, att, bias)
    assert y.shape == (B, node_n, out_f)
    assert jnp.allclose(y, y_ref, atol=1e-4, rtol=1e-4)

    # 2) bias=False specialization (no zero tensors materialized / DMA'd).
    y_nb = jax.block_until_ready(graph_conv(x, weight, att, None))
    assert jnp.allclose(y_nb, graph_conv_ref(x, weight, att), atol=1e-4, rtol=1e-4)

    # 3) decoder-shaped (Fin=32 -> Fout=16), same single-template path.
    w_dec = jax.random.uniform(kw, (out_f, in_f), jnp.float32, -stdv, stdv)
    b_dec = bias[:in_f]
    x_dec = jax.random.normal(kx2, (B, node_n, out_f), jnp.float32)
    y_dec = jax.block_until_ready(graph_conv(x_dec, w_dec, att, b_dec))
    assert jnp.allclose(y_dec, graph_conv_ref(x_dec, w_dec, att, b_dec),
                        atol=1e-4, rtol=1e-4)

    # 4) un-batched 2D input (N, Fin) — torch.matmul broadcasting also allows it.
    y_2d = jax.block_until_ready(graph_conv(x[0], weight, att, bias))
    assert jnp.allclose(y_2d, graph_conv_ref(x[0], weight, att, bias),
                        atol=1e-4, rtol=1e-4)

    assert jnp.all(jnp.isfinite(y))
    print("KERNEL_OK")
</pallas_src>

<mosaic_0001>
module attributes {stable_mosaic.version = 11 : i64} {
  func.func @_gcn_kernel(%arg0: memref<96x16xf32, #tpu.memory_space<vmem>>, %arg1: memref<16x32xf32, #tpu.memory_space<vmem>>, %arg2: memref<48x48xf32, #tpu.memory_space<vmem>>, %arg3: memref<1x64xf32, #tpu.memory_space<vmem>>, %arg4: memref<48x64xf32, #tpu.memory_space<vmem>>, %arg5: memref<48x64xf32, #tpu.memory_space<vmem>>) attributes {dimension_semantics = [], scalar_prefetch = 0 : i64, scratch_operands = 1 : i64, tpu.core_type = #tpu.core_type<tc>} {
    %c0 = arith.constant 0 : index
    %c0_0 = arith.constant 0 : index
    %0 = vector.load %arg0[%c0, %c0_0] : memref<96x16xf32, #tpu.memory_space<vmem>>, vector<96x16xf32>
    %c0_1 = arith.constant 0 : index
    %c0_2 = arith.constant 0 : index
    %1 = vector.load %arg1[%c0_1, %c0_2] : memref<16x32xf32, #tpu.memory_space<vmem>>, vector<16x32xf32>
    %cst = arith.constant dense<0.000000e+00> : vector<96x32xf32>
    %2 = tpu.matmul %0, %1, %cst {dimension_numbers = #tpu.dot_dimension_numbers<[1], [0], [0], [1], [0, 0, 1, 1], [], []>} : vector<96x16xf32>, vector<16x32xf32>, vector<96x32xf32> -> vector<96x32xf32>
    %3 = vector.extract_strided_slice %2 {offsets = [0, 0], sizes = [48, 32], strides = [1, 1]} : vector<96x32xf32> to vector<48x32xf32>
    %c0_3 = arith.constant 0 : index
    %c0_4 = arith.constant 0 : index
    %4 = vector.load %arg5[%c0_3, %c0_4] : memref<48x64xf32, #tpu.memory_space<vmem>>, vector<48x32xf32>
    tpu.vector_store %arg5[%c0_3, %c0_4], %3 {strides = array<i32>} : memref<48x64xf32, #tpu.memory_space<vmem>>, vector<48x32xf32>,
    %5 = vector.extract_strided_slice %2 {offsets = [48, 0], sizes = [48, 32], strides = [1, 1]} : vector<96x32xf32> to vector<48x32xf32>
    %c0_5 = arith.constant 0 : index
    %c32 = arith.constant 32 : index
    %6 = vector.load %arg5[%c0_5, %c32] : memref<48x64xf32, #tpu.memory_space<vmem>>, vector<48x32xf32>
    tpu.vector_store %arg5[%c0_5, %c32], %5 {strides = array<i32>} : memref<48x64xf32, #tpu.memory_space<vmem>>, vector<48x32xf32>,
    %c0_6 = arith.constant 0 : index
    %c0_7 = arith.constant 0 : index
    %7 = vector.load %arg2[%c0_6, %c0_7] : memref<48x48xf32, #tpu.memory_space<vmem>>, vector<48x48xf32>
    %c0_8 = arith.constant 0 : index
    %c0_9 = arith.constant 0 : index
    %8 = vector.load %arg5[%c0_8, %c0_9] : memref<48x64xf32, #tpu.memory_space<vmem>>, vector<48x64xf32>
    %cst_10 = arith.constant dense<0.000000e+00> : vector<48x64xf32>
    %9 = tpu.matmul %7, %8, %cst_10 {dimension_numbers = #tpu.dot_dimension_numbers<[1], [0], [0], [1], [0, 0, 1, 1], [], []>} : vector<48x48xf32>, vector<48x64xf32>, vector<48x64xf32> -> vector<48x64xf32>
    %c0_11 = arith.constant 0 : index
    %c0_12 = arith.constant 0 : index
    %10 = vector.load %arg3[%c0_11, %c0_12] : memref<1x64xf32, #tpu.memory_space<vmem>>, vector<1x64xf32>
    %11 = vector.broadcast %10 : vector<1x64xf32> to vector<48x64xf32>
    %12 = arith.addf %9, %11 : vector<48x64xf32>
    %c0_13 = arith.constant 0 : index
    %c0_14 = arith.constant 0 : index
    %13 = vector.load %arg4[%c0_13, %c0_14] : memref<48x64xf32, #tpu.memory_space<vmem>>, vector<48x64xf32>
    tpu.vector_store %arg4[%c0_13, %c0_14], %12 {strides = array<i32>} : memref<48x64xf32, #tpu.memory_space<vmem>>, vector<48x64xf32>,
    return
  }
}

</mosaic_0001>

<llo_original>
// kernel: tpu_custom_call.1
$region0: #{tpu_custom_call.1}
  #allocation0 [shape = 'u32[]', space=smem, size = 0x4, offset = 0x4, fixed_abs, tag = 'smem constant byte address 0x4 - core index']
  #allocation1 [shape = 'u32[72,128]{1,0:T(1,128)}', space=vmem, size = 0x9000, scoped, tag = 'internal scratch']
  #allocation2 [shape = 'f32[48,64]{1,0:T(8,128)}', space=vmem, size = 0x6000, scoped, tag = 'scratch operand']
  %s0 = inlined_call_operand.vmem [shape: f32[96,16], index: 0, kind: input, shape index: {}]
  %s1 = inlined_call_operand.vmem [shape: f32[16,32], index: 1, kind: input, shape index: {}]
  %s2 = inlined_call_operand.vmem [shape: f32[48,48], index: 2, kind: input, shape index: {}]
  %s3 = inlined_call_operand.vmem [shape: f32[1,64], index: 3, kind: input, shape index: {}]
  %s4 = inlined_call_operand.hbm [shape: f32[48,64], index: 4, kind: output, shape index: {}]
  %s5 = sld [smem:[#allocation0]]
  $region26: #{tpu_custom_call.1} parent=0
    _
  %s7 = ssub.s32 1, %s5
  %s8 = scalar_select 0, %s7, %s5
  $region1: #{tpu_custom_call.1} parent=0
    #allocation3 [shape = 'u8[24576]{0}', space=vmem, size = 0x6000, scoped, tag = 'output window, operand 0, single buffered']
    #allocation4 [shape = 's32[1]{0}', space=sflag, size = 0x4, scoped, tag = 'scoped memory for tpu_custom_call.1']
    %9 = vsyncpa [#allocation4], 0
    // Predicated region
    $region2: #{tpu_custom_call.1} parent=1 // pred_check
      _
    $region3: #{tpu_custom_call.1} parent=1 // pred_check_branch
      %11 = sbr.rel (0) target = $region5
    $region4: #{tpu_custom_call.1} parent=1 // pred_region
      _
    $region5: #{tpu_custom_call.1} parent=1 // pred_fallthru
      _
    // Predicated region
    $region6: #{tpu_custom_call.1} parent=1 // pred_check
      _
    $region7: #{tpu_custom_call.1} parent=1 // pred_check_branch
      %13 = sbr.rel (0) target = $region9
    $region8: #{tpu_custom_call.1} parent=1 // pred_region
      _
    $region9: #{tpu_custom_call.1} parent=1 // pred_fallthru
      _
    // Predicated region
    $region10: #{tpu_custom_call.1} parent=1 // pred_check
      _
    $region11: #{tpu_custom_call.1} parent=1 // pred_check_branch
      %15 = sbr.rel (0) target = $region13
    $region12: #{tpu_custom_call.1} parent=1 // pred_region
      _
    $region13: #{tpu_custom_call.1} parent=1 // pred_fallthru
      _
    // Predicated region
    $region14: #{tpu_custom_call.1} parent=1 // pred_check
      _
    $region15: #{tpu_custom_call.1} parent=1 // pred_check_branch
      %17 = sbr.rel (0) target = $region17
    $region16: #{tpu_custom_call.1} parent=1 // pred_region
      _
    $region17: #{tpu_custom_call.1} parent=1 // pred_fallthru
      _
    %v18 = vld [vmem:[%s0] sm:$0xff]
    %v19 = vld [vmem:[%s0 + $0x8] sm:$0xff]
    %v20 = vld [vmem:[%s0 + $0x10] sm:$0xff]
    %v21 = vld [vmem:[%s0 + $0x18] sm:$0xff]
    %v22 = vld [vmem:[%s0 + $0x20] sm:$0xff]
    %v23 = vld [vmem:[%s0 + $0x28] sm:$0xff]
    %v24 = vld [vmem:[%s0 + $0x30] sm:$0xff]
    %v25 = vld [vmem:[%s0 + $0x38] sm:$0xff]
    %v26 = vld [vmem:[%s0 + $0x40] sm:$0xff]
    %v27 = vld [vmem:[%s0 + $0x48] sm:$0xff]
    %v28 = vld [vmem:[%s0 + $0x50] sm:$0xff]
    %v29 = vld [vmem:[%s0 + $0x58] sm:$0xff]
    %v30 = vld [vmem:[%s1] sm:$0xff]
    %v31 = vld [vmem:[%s1 + $0x8] sm:$0xff]
    %vm32 = vcmask 130048
    %v34 = vsel %vm32, %v18, 0
    %v37 = vsel %vm32, %v19, 0
    %v40 = vsel %vm32, %v20, 0
    %v43 = vsel %vm32, %v21, 0
    %v46 = vsel %vm32, %v22, 0
    %v49 = vsel %vm32, %v23, 0
    %v52 = vsel %vm32, %v24, 0
    %v55 = vsel %vm32, %v25, 0
    %v58 = vsel %vm32, %v26, 0
    %v61 = vsel %vm32, %v27, 0
    %v64 = vsel %vm32, %v28, 0
    %v67 = vsel %vm32, %v29, 0
    %69 = vmatpush.msra.mxu0 0.0
    %70 = vmatpush.msra.mxu0 0.0
    %71 = vmatpush.msra.mxu0 0.0
    %72 = vmatpush.msra.mxu0 0.0
    %73 = vmatpush.msra.mxu0 0.0
    %74 = vmatpush.msra.mxu0 0.0
    %75 = vmatpush.msra.mxu0 0.0
    %76 = vmatpush.msra.mxu0 0.0
    %77 = vmatpush.msra.mxu0 0.0
    %78 = vmatpush.msra.mxu0 0.0
    %79 = vmatpush.msra.mxu0 0.0
    %80 = vmatpush.msra.mxu0 0.0
    %81 = vmatpush.msra.mxu0 0.0
    %82 = vmatpush.msra.mxu0 0.0
    %83 = vmatpush.msra.mxu0 %v31
    %84 = vmatpush.msra.mxu0 %v30
    %85 = vmatmul.f32.gmra.mxu0 %v34
    %v86 = vpop.f32.mrf.mxu0
    %v87 = vadd.f32 0.0, %v86
    %88 = vmatmul.f32.gmra.mxu0 %v37
    %v89 = vpop.f32.mrf.mxu0
    %v90 = vadd.f32 0.0, %v89
    %91 = vmatmul.f32.gmra.mxu0 %v40
    %v92 = vpop.f32.mrf.mxu0
    %v93 = vadd.f32 0.0, %v92
    %94 = vmatmul.f32.gmra.mxu0 %v43
    %v95 = vpop.f32.mrf.mxu0
    %v96 = vadd.f32 0.0, %v95
    %97 = vmatmul.f32.gmra.mxu0 %v46
    %v98 = vpop.f32.mrf.mxu0
    %v99 = vadd.f32 0.0, %v98
    %100 = vmatmul.f32.gmra.mxu0 %v49
    %v101 = vpop.f32.mrf.mxu0
    %v102 = vadd.f32 0.0, %v101
    %103 = vmatmul.f32.gmra.mxu0 %v52
    %v104 = vpop.f32.mrf.mxu0
    %v105 = vadd.f32 0.0, %v104
    %106 = vmatmul.f32.gmra.mxu0 %v55
    %v107 = vpop.f32.mrf.mxu0
    %v108 = vadd.f32 0.0, %v107
    %109 = vmatmul.f32.gmra.mxu0 %v58
    %v110 = vpop.f32.mrf.mxu0
    %v111 = vadd.f32 0.0, %v110
    %112 = vmatmul.f32.gmra.mxu0 %v61
    %v113 = vpop.f32.mrf.mxu0
    %v114 = vadd.f32 0.0, %v113
    %115 = vmatmul.f32.gmra.mxu0 %v64
    %v116 = vpop.f32.mrf.mxu0
    %v117 = vadd.f32 0.0, %v116
    %118 = vmatmul.f32.gmra.mxu0 %v67
    %v119 = vpop.f32.mrf.mxu0
    %v120 = vadd.f32 0.0, %v119
    %121 = vdwg.mxu0
    %vm122 = vcmask 261120
    %123 = vst.msk [vmem:[#allocation2] sm:$0xff] %vm122, %v87
    %124 = vst.msk [vmem:[#allocation2 + $0x8] sm:$0xff] %vm122, %v90
    %125 = vst.msk [vmem:[#allocation2 + $0x10] sm:$0xff] %vm122, %v93
    %126 = vst.msk [vmem:[#allocation2 + $0x18] sm:$0xff] %vm122, %v96
    %127 = vst.msk [vmem:[#allocation2 + $0x20] sm:$0xff] %vm122, %v99
    %128 = vst.msk [vmem:[#allocation2 + $0x28] sm:$0xff] %vm122, %v102
    %135 = vrot.lane.b32.xlu0 %v105, 32
    %v136 = vpop.permute.xlu0 %135
    %137 = vrot.lane.b32.xlu0 %v108, 32
    %v138 = vpop.permute.xlu0 %137
    %139 = vrot.lane.b32.xlu0 %v111, 32
    %v140 = vpop.permute.xlu0 %139
    %141 = vrot.lane.b32.xlu0 %v114, 32
    %v142 = vpop.permute.xlu0 %141
    %143 = vrot.lane.b32.xlu0 %v117, 32
    %v144 = vpop.permute.xlu0 %143
    %145 = vrot.lane.b32.xlu0 %v120, 32
    %v146 = vpop.permute.xlu0 %145
    %vm153 = vcmask 523520
    %154 = vst.msk [vmem:[#allocation2] sm:$0xff] %vm153, %v136
    %155 = vst.msk [vmem:[#allocation2 + $0x8] sm:$0xff] %vm153, %v138
    %156 = vst.msk [vmem:[#allocation2 + $0x10] sm:$0xff] %vm153, %v140
    %157 = vst.msk [vmem:[#allocation2 + $0x18] sm:$0xff] %vm153, %v142
    %158 = vst.msk [vmem:[#allocation2 + $0x20] sm:$0xff] %vm153, %v144
    %159 = vst.msk [vmem:[#allocation2 + $0x28] sm:$0xff] %vm153, %v146
    %v160 = vld [vmem:[%s2] sm:$0xff]
    %v161 = vld [vmem:[%s2 + $0x8] sm:$0xff]
    %v162 = vld [vmem:[%s2 + $0x10] sm:$0xff]
    %v163 = vld [vmem:[%s2 + $0x18] sm:$0xff]
    %v164 = vld [vmem:[%s2 + $0x20] sm:$0xff]
    %v165 = vld [vmem:[%s2 + $0x28] sm:$0xff]
    %v166 = vld [vmem:[#allocation2] sm:$0xff]
    %v167 = vld [vmem:[#allocation2 + $0x8] sm:$0xff]
    %v168 = vld [vmem:[#allocation2 + $0x10] sm:$0xff]
    %v169 = vld [vmem:[#allocation2 + $0x18] sm:$0xff]
    %v170 = vld [vmem:[#allocation2 + $0x20] sm:$0xff]
    %v171 = vld [vmem:[#allocation2 + $0x28] sm:$0xff]
    %v172 = vld [vmem:[%s3] sm:$0x1]
    %v174 = vperm.slane %v172, 0
    %vm176 = vcmask 392192
    %v178 = vsel %vm176, %v160, 0
    %v181 = vsel %vm176, %v161, 0
    %v184 = vsel %vm176, %v162, 0
    %v187 = vsel %vm176, %v163, 0
    %v190 = vsel %vm176, %v164, 0
    %v193 = vsel %vm176, %v165, 0
    %195 = vmatpush.msra.mxu0 0.0
    %196 = vmatpush.msra.mxu0 0.0
    %197 = vmatpush.msra.mxu0 0.0
    %198 = vmatpush.msra.mxu0 0.0
    %199 = vmatpush.msra.mxu0 0.0
    %200 = vmatpush.msra.mxu0 0.0
    %201 = vmatpush.msra.mxu0 0.0
    %202 = vmatpush.msra.mxu0 0.0
    %203 = vmatpush.msra.mxu0 0.0
    %204 = vmatpush.msra.mxu0 0.0
    %205 = vmatpush.msra.mxu0 %v171
    %206 = vmatpush.msra.mxu0 %v170
    %207 = vmatpush.msra.mxu0 %v169
    %208 = vmatpush.msra.mxu0 %v168
    %209 = vmatpush.msra.mxu0 %v167
    %210 = vmatpush.msra.mxu0 %v166
    %211 = vmatmul.f32.gmra.mxu0 %v178
    %v212 = vpop.f32.mrf.mxu0
    %v213 = vadd.f32 %v174, %v212
    %214 = vmatmul.f32.gmra.mxu0 %v181
    %v215 = vpop.f32.mrf.mxu0
    %v216 = vadd.f32 %v174, %v215
    %217 = vmatmul.f32.gmra.mxu0 %v184
    %v218 = vpop.f32.mrf.mxu0
    %v219 = vadd.f32 %v174, %v218
    %220 = vmatmul.f32.gmra.mxu0 %v187
    %v221 = vpop.f32.mrf.mxu0
    %v222 = vadd.f32 %v174, %v221
    %223 = vmatmul.f32.gmra.mxu0 %v190
    %v224 = vpop.f32.mrf.mxu0
    %v225 = vadd.f32 %v174, %v224
    %226 = vmatmul.f32.gmra.mxu0 %v193
    %v227 = vpop.f32.mrf.mxu0
    %v228 = vadd.f32 %v174, %v227
    %229 = vdwg.mxu0
    %vm230 = vcmask 523264
    %231 = vst.msk [vmem:[#allocation3] sm:$0xff] %vm230, %v213
    %232 = vst.msk [vmem:[#allocation3 + $0x8] sm:$0xff] %vm230, %v216
    %233 = vst.msk [vmem:[#allocation3 + $0x10] sm:$0xff] %vm230, %v219
    %234 = vst.msk [vmem:[#allocation3 + $0x18] sm:$0xff] %vm230, %v222
    %235 = vst.msk [vmem:[#allocation3 + $0x20] sm:$0xff] %vm230, %v225
    %236 = vst.msk [vmem:[#allocation3 + $0x28] sm:$0xff] %vm230, %v228
    // Predicated region
    $region18: #{tpu_custom_call.1} parent=1 // pred_check
      _
    $region19: #{tpu_custom_call.1} parent=1 // pred_check_branch
      %238 = sbr.rel (0) target = $region21
    $region20: #{tpu_custom_call.1} parent=1 // pred_region
      %240 = vsyncadd [#allocation4], 0
      %s241 = sshll.u32 [#allocation3], 4
      %s242 = int_to_ptr.vmem [resolvable:$true] %s241
      %s243 = sshll.u32 %s4, 4
      %s244 = int_to_ptr.hbm [resolvable:$true] %s243
      %249 = dma.vmem_to_hbm [thread:$0]  %s242, 768, %s244, [#allocation4], 128, 128, 8
    $region21: #{tpu_custom_call.1} parent=1 // pred_fallthru
      _
    // Predicated region
    $region22: #{tpu_custom_call.1} parent=1 // pred_check
      _
    $region23: #{tpu_custom_call.1} parent=1 // pred_check_branch
      %251 = sbr.rel (0) target = $region25
    $region24: #{tpu_custom_call.1} parent=1 // pred_region
      %253 = dma.done [#allocation4], 768
    $region25: #{tpu_custom_call.1} parent=1 // pred_fallthru
      _
    %254 = vsyncpa [#allocation4], 1

</llo_original>
